<compile_context>
chip_gen: v7x
topology: tpu7x:2x2x1
jax: 0.10.0
libtpu: 0.0.40
codegen_flags: <defaults>
</compile_context>

<pallas_src>
import functools

import numpy as np
import jax
import jax.numpy as jnp
from jax.experimental import pallas as pl
from jax.experimental.pallas import tpu as pltpu


# ---------------- synthetic FLAGS (deterministic config) ----------------
class FLAGS:
    recon_shift_w = 3.0
    recon_reg_delta_w = 0.05
    recon_point_mask_w = 1.0
    balance_weight_uncertainty_shift = 0.001
    point_mask_min_threshold = 4


# laplacian_aleatoric_uncertainty_loss (sum_last_dim=True, reduction='mean'):
#   loss = 1.4142 * exp(-0.5*log_var) * |pred - gt|.sum(-1) + bw * log_var
_LAPLACE_C = 1.4142


# ---------------------------- Pallas kernel ----------------------------
def _recon_point_kernel(pc_ref, fs_ref, flog_ref, fsd_ref, mc_ref, tab_ref,
                        out_ref, *, balance_weight):
    # pc_ref  : (Bb, 3, N)      point cloud, coord on sublanes, points on lanes
    # fs_ref  : (Bb, 3, 6, N)   predicted face shifts, [b, coord, face, point]
    # flog_ref: (Bb, 6, N)      per-face log variance
    # fsd_ref : (Bb, 18, N)     face_shift_delta (only |.| sum needed)
    # mc_ref  : (Bb, 2, N)      row 0 = point mask (0/1), row 1 = mask conf
    # tab_ref : (Bb, 6, 8)      cols: [ax_x, ax_y, ax_z, d0, face_w, 0, 0, 0]
    #                           d0 = half_size + <axis, gt_t>
    # out_ref : (1, 1, 128)     lanes 0..2 = (shift_sum, reg_sum, pm_sum)
    pc = pc_ref[...]
    fs = fs_ref[...]
    flog = flog_ref[...]
    mc = mc_ref[...]
    tab = tab_ref[...]

    mask = mc[:, 0:1, :]                                   # (Bb, 1, N)
    conf = mc[:, 1:2, :]                                   # (Bb, 1, N)

    # signed distance of each point to each gt face plane (all 6 faces fused):
    #   dis[b,f,n] = d0[b,f] - sum_d axis[b,f,d] * pc[b,d,n]
    proj = (tab[:, :, 0:1] * pc[:, 0:1, :]
            + tab[:, :, 1:2] * pc[:, 1:2, :]
            + tab[:, :, 2:3] * pc[:, 2:3, :])              # (Bb, 6, N)
    dis = tab[:, :, 3:4] - proj                            # (Bb, 6, N)

    # per-point L1 over the 3 coords of (pred_shift - dis * axis)
    a = (jnp.abs(fs[:, 0] - dis * tab[:, :, 0:1])
         + jnp.abs(fs[:, 1] - dis * tab[:, :, 1:2])
         + jnp.abs(fs[:, 2] - dis * tab[:, :, 2:3]))       # (Bb, 6, N)

    # laplacian aleatoric uncertainty loss element
    elem = _LAPLACE_C * jnp.exp(-0.5 * flog) * a + balance_weight * flog

    # masked mean over points, face-weighted, summed over faces & batch
    count = jnp.sum(mask, axis=-1, keepdims=True)          # (Bb, 1, 1)
    inv_count = jnp.where(count > 0.0, 1.0 / jnp.maximum(count, 1.0), 0.0)
    w = tab[:, :, 4:5] * inv_count                         # (Bb, 6, 1)
    face_sum = jnp.sum(elem * mask, axis=-1, keepdims=True)   # (Bb, 6, 1)
    shift_sum = jnp.sum(face_sum * w)                      # scalar

    reg_sum = jnp.sum(jnp.abs(fsd_ref[...]))               # scalar
    pm_sum = jnp.sum(jnp.abs(conf - mask))                 # scalar

    lane = jax.lax.broadcasted_iota(jnp.int32, (1, 1, 128), 2)
    out_ref[...] = (jnp.where(lane == 0, shift_sum, 0.0)
                    + jnp.where(lane == 1, reg_sum, 0.0)
                    + jnp.where(lane == 2, pm_sum, 0.0))


def _run_recon_point_kernel(pc_t, fs_cm, flog_t, fsd_t, mc, tab,
                            balance_weight, bb=None):
    B, _, N = pc_t.shape
    if bb is None:
        bb = B                                   # whole batch per grid step
    assert B % bb == 0
    nblk = B // bb

    kernel = functools.partial(_recon_point_kernel,
                               balance_weight=balance_weight)
    in_specs = [
        pl.BlockSpec((bb, 3, N), lambda i: (i, 0, 0)),        # pc (coord-major)
        pl.BlockSpec((bb, 3, 6, N), lambda i: (i, 0, 0, 0)),  # face_shift
        pl.BlockSpec((bb, 6, N), lambda i: (i, 0, 0)),        # F_log_var
        pl.BlockSpec((bb, 18, N), lambda i: (i, 0, 0)),       # face_shift_delta
        pl.BlockSpec((bb, 2, N), lambda i: (i, 0, 0)),        # packed mask/conf
        pl.BlockSpec((bb, 6, 8), lambda i: (i, 0, 0)),        # packed face table
    ]
    out_specs = pl.BlockSpec((1, 1, 128), lambda i: (i, 0, 0))
    out_shape = jax.ShapeDtypeStruct((nblk, 1, 128), jnp.float32)

    return pl.pallas_call(
        kernel,
        out_shape=out_shape,
        grid=(nblk,),
        in_specs=in_specs,
        out_specs=out_specs,
        compiler_params=pltpu.CompilerParams(
            dimension_semantics=("parallel",)),
    )(pc_t, fs_cm, flog_t, fsd_t, mc, tab)


# --------------------------- wrapper (glue) ---------------------------
def _build_face_table(gt_R, gt_t, gt_s, sym, obj_ids):
    """Pack per-face signed axes, folded plane offsets and face weights."""
    r_x = gt_R[:, :, 0]
    r_y = gt_R[:, :, 1]
    r_z = gt_R[:, :, 2]
    # face order: y+, x+, z+, x-, z-, y-   (matches face_shift column layout)
    axes = jnp.stack([r_y, r_x, r_z, -r_x, -r_z, -r_y], axis=1)        # (B,6,3)
    offs = jnp.stack([gt_s[:, 1], gt_s[:, 0], gt_s[:, 2],
                      gt_s[:, 0], gt_s[:, 2], gt_s[:, 1]], axis=1) * 0.5  # (B,6)
    # fold gt_t into the plane offset: dis = (off + <axis, t>) - <axis, pc>
    d0 = offs + jnp.einsum('bfd,bd->bf', axes, gt_t)                   # (B,6)
    sym0 = (sym[:, 0] == 0)
    not5 = (obj_ids != 5)
    wy = jnp.ones(sym0.shape, jnp.float32)
    wz = sym0.astype(jnp.float32)
    wx = (sym0 & not5).astype(jnp.float32)
    fw = jnp.stack([wy, wx, wz, wx, wz, wy], axis=1)                   # (B,6)
    pad = jnp.zeros(axes.shape[:2] + (3,), jnp.float32)
    tab = jnp.concatenate(
        [axes, d0[..., None], fw[..., None], pad], axis=-1)            # (B,6,8)
    return tab.astype(jnp.float32)


def recon_6face_loss_forward(name_list, pred_list, gt_list, sym, obj_ids):
    loss_list = {}
    if 'Per_point' in name_list:
        pc = gt_list['Points'].astype(jnp.float32)                    # (B,N,3)
        face_shift = pred_list['face_shift'].astype(jnp.float32)      # (B,N,18)
        f_log_var = pred_list['F_log_var'].astype(jnp.float32)        # (B,N,6)
        fs_delta = pred_list['face_shift_delta'].astype(jnp.float32)  # (B,N,18)
        conf = pred_list['Point_mask_conf'].astype(jnp.float32)       # (B,N)
        gt_R = gt_list['R'].astype(jnp.float32)                       # (B,3,3)
        gt_t = gt_list['T'].astype(jnp.float32)                       # (B,3)
        gt_s = gt_list['Size'].astype(jnp.float32)                    # (B,3)
        mask = gt_list['Point_mask']                                  # (B,N) bool

        B, N, _ = pc.shape
        # lane-dense layouts: point axis N last (lanes), small dims on sublanes
        pc_t = jnp.transpose(pc, (0, 2, 1))                                   # (B,3,N)
        fs_cm = jnp.transpose(face_shift.reshape(B, N, 6, 3), (0, 3, 2, 1))   # (B,3,6,N)
        flog_t = jnp.transpose(f_log_var, (0, 2, 1))                          # (B,6,N)
        fsd_t = jnp.transpose(fs_delta, (0, 2, 1))                            # (B,18,N)
        mc = jnp.stack([mask.astype(jnp.float32), conf], axis=1)              # (B,2,N)
        tab = _build_face_table(gt_R, gt_t, gt_s, sym, obj_ids)               # (B,6,8)

        partial = _run_recon_point_kernel(
            pc_t, fs_cm, flog_t, fsd_t, mc, tab,
            FLAGS.balance_weight_uncertainty_shift)
        sums = jnp.sum(partial, axis=(0, 1))                                  # (128,)
        shift_sum, reg_sum, pm_sum = sums[0], sums[1], sums[2]

        # `len(point_mask_now) <= threshold` in the reference uses the total
        # number of points N (static), so it is a whole-batch static skip.
        if N <= FLAGS.point_mask_min_threshold:
            res_shift = jnp.float32(0.0)
        else:
            res_shift = shift_sum / 6.0 / B

        loss_list['recon_per_p'] = FLAGS.recon_shift_w * res_shift
        loss_list['recon_reg_delta'] = FLAGS.recon_reg_delta_w * (
            reg_sum / (B * N * 18))
        loss_list['recon_point_mask'] = FLAGS.recon_point_mask_w * (
            pm_sum / (B * N))
    # TODO(synk): 'Consistency' and 'Point_voting' branches not implemented.
    return loss_list


# ------------------------- pure-JAX reference -------------------------
def _reference_forward(pred_list, gt_list, sym, obj_ids):
    """Spec-faithful (pc_cano based) pure-JAX implementation for checking."""
    pc = gt_list['Points'].astype(jnp.float32)
    face_shift = pred_list['face_shift'].astype(jnp.float32)
    f_log_var = pred_list['F_log_var'].astype(jnp.float32)
    fs_delta = pred_list['face_shift_delta'].astype(jnp.float32)
    conf = pred_list['Point_mask_conf'].astype(jnp.float32)
    gt_R = gt_list['R'].astype(jnp.float32)
    gt_t = gt_list['T'].astype(jnp.float32)
    gt_s = gt_list['Size'].astype(jnp.float32)
    mask = gt_list['Point_mask']
    B, N, _ = pc.shape
    mask_f = mask.astype(jnp.float32)
    count = jnp.sum(mask_f, axis=1)                              # (B,)

    # pc_cano = R^T (pc - t)
    pc_cano = jnp.einsum('bji,bnj->bni', gt_R, pc - gt_t[:, None, :])
    c0, c1, c2 = pc_cano[..., 0], pc_cano[..., 1], pc_cano[..., 2]
    s0, s1, s2 = gt_s[:, 0:1], gt_s[:, 1:2], gt_s[:, 2:3]

    r_x, r_y, r_z = gt_R[:, :, 0], gt_R[:, :, 1], gt_R[:, :, 2]
    axes = jnp.stack([r_y, r_x, r_z, -r_x, -r_z, -r_y], axis=1)  # (B,6,3)
    dis = jnp.stack([s1 / 2 - c1, s0 / 2 - c0, s2 / 2 - c2,
                     c0 + s0 / 2, c2 + s2 / 2, c1 + s1 / 2], axis=-1)  # (B,N,6)

    sg = dis[..., None] * axes[:, None, :, :]                    # (B,N,6,3)
    sp = face_shift.reshape(B, N, 6, 3)
    a = jnp.sum(jnp.abs(sp - sg), axis=-1)                       # (B,N,6)
    elem = _LAPLACE_C * jnp.exp(-0.5 * f_log_var) * a \
        + FLAGS.balance_weight_uncertainty_shift * f_log_var
    face_sum = jnp.sum(elem * mask_f[..., None], axis=1)         # (B,6)

    sym0 = (sym[:, 0] == 0)
    not5 = (obj_ids != 5)
    wy = jnp.ones(sym0.shape, jnp.float32)
    wz = sym0.astype(jnp.float32)
    wx = (sym0 & not5).astype(jnp.float32)
    fw = jnp.stack([wy, wx, wz, wx, wz, wy], axis=1)             # (B,6)
    res_shift = jnp.sum(fw * face_sum / count[:, None]) / 6.0 / B

    return {
        'recon_per_p': FLAGS.recon_shift_w * res_shift,
        'recon_reg_delta': FLAGS.recon_reg_delta_w * jnp.mean(jnp.abs(fs_delta)),
        'recon_point_mask': FLAGS.recon_point_mask_w
        * jnp.mean(jnp.abs(conf - mask_f)),
    }


# -------------------------------- main --------------------------------
if __name__ == "__main__":
    key = jax.random.PRNGKey(0)
    B, N = 4, 128

    ks = jax.random.split(key, 12)
    pc = jax.random.normal(ks[0], (B, N, 3), jnp.float32)

    # random rotation matrices via QR (proper rotations)
    m = jax.random.normal(ks[1], (B, 3, 3), jnp.float32)
    q, _ = jnp.linalg.qr(m)
    det = jnp.linalg.det(q)
    q = q * jnp.stack([jnp.ones_like(det), jnp.ones_like(det), det],
                      axis=-1)[:, None, :]
    gt_R = q

    gt_t = 0.1 * jax.random.normal(ks[2], (B, 3), jnp.float32)
    gt_s = jax.random.uniform(ks[3], (B, 3), jnp.float32, 0.2, 0.6)

    face_shift = 0.5 * jax.random.normal(ks[4], (B, N, 18), jnp.float32)
    f_log_var = 0.5 * jax.random.normal(ks[5], (B, N, 6), jnp.float32)
    fs_delta = 0.1 * jax.random.normal(ks[6], (B, N, 18), jnp.float32)
    conf = jax.random.uniform(ks[7], (B, N), jnp.float32)
    mask = jax.random.uniform(ks[8], (B, N), jnp.float32) < 0.8
    mask = mask.at[:, 0].set(True)                       # >=1 valid point / batch

    sym = jnp.array([[0], [1], [0], [0]], jnp.int32)     # batch 1 is symmetric
    obj_ids = jnp.array([1, 2, 5, 3], jnp.int32)         # batch 2 is obj_id 5

    pred_list = {'face_shift': face_shift, 'F_log_var': f_log_var,
                 'face_shift_delta': fs_delta, 'Point_mask_conf': conf}
    gt_list = {'Points': pc, 'R': gt_R, 'T': gt_t, 'Size': gt_s,
               'Point_mask': mask}

    out = recon_6face_loss_forward(['Per_point'], pred_list, gt_list, sym, obj_ids)
    out = jax.tree_util.tree_map(jax.block_until_ready, out)

    ref = _reference_forward(pred_list, gt_list, sym, obj_ids)
    for k in out:
        np.testing.assert_allclose(np.asarray(out[k]), np.asarray(ref[k]),
                                   rtol=1e-4, atol=1e-4)
    print("KERNEL_OK")
</pallas_src>

<mosaic_0001>
module attributes {stable_mosaic.version = 11 : i64} {
  func.func @_recon_point_kernel(%arg0: i32, %arg1: memref<4x3x128xf32, #tpu.memory_space<vmem>>, %arg2: memref<4x3x6x128xf32, #tpu.memory_space<vmem>>, %arg3: memref<4x6x128xf32, #tpu.memory_space<vmem>>, %arg4: memref<4x18x128xf32, #tpu.memory_space<vmem>>, %arg5: memref<4x2x128xf32, #tpu.memory_space<vmem>>, %arg6: memref<4x6x8xf32, #tpu.memory_space<vmem>>, %arg7: memref<1x1x128xf32, #tpu.memory_space<vmem>>) attributes {dimension_semantics = [#tpu.dimension_semantics<parallel>], iteration_bounds = array<i64: 1>, scalar_prefetch = 0 : i64, scratch_operands = 0 : i64, tpu.core_type = #tpu.core_type<tc>, window_params = [{transform_indices = @transform_0, window_bounds = array<i64: 4, 3, 128>}, {transform_indices = @transform_1, window_bounds = array<i64: 4, 3, 6, 128>}, {transform_indices = @transform_2, window_bounds = array<i64: 4, 6, 128>}, {transform_indices = @transform_3, window_bounds = array<i64: 4, 18, 128>}, {transform_indices = @transform_4, window_bounds = array<i64: 4, 2, 128>}, {transform_indices = @transform_5, window_bounds = array<i64: 4, 6, 8>}, {transform_indices = @transform_6, window_bounds = array<i64: 1, 1, 128>}]} {
    %c0 = arith.constant 0 : index
    %c0_0 = arith.constant 0 : index
    %c0_1 = arith.constant 0 : index
    %0 = vector.load %arg1[%c0, %c0_0, %c0_1] : memref<4x3x128xf32, #tpu.memory_space<vmem>>, vector<4x3x128xf32>
    %c0_2 = arith.constant 0 : index
    %c0_3 = arith.constant 0 : index
    %c0_4 = arith.constant 0 : index
    %c0_5 = arith.constant 0 : index
    %1 = vector.load %arg2[%c0_2, %c0_3, %c0_4, %c0_5] : memref<4x3x6x128xf32, #tpu.memory_space<vmem>>, vector<4x3x6x128xf32>
    %c0_6 = arith.constant 0 : index
    %c0_7 = arith.constant 0 : index
    %c0_8 = arith.constant 0 : index
    %2 = vector.load %arg3[%c0_6, %c0_7, %c0_8] : memref<4x6x128xf32, #tpu.memory_space<vmem>>, vector<4x6x128xf32>
    %c0_9 = arith.constant 0 : index
    %c0_10 = arith.constant 0 : index
    %c0_11 = arith.constant 0 : index
    %3 = vector.load %arg5[%c0_9, %c0_10, %c0_11] : memref<4x2x128xf32, #tpu.memory_space<vmem>>, vector<4x2x128xf32>
    %c0_12 = arith.constant 0 : index
    %c0_13 = arith.constant 0 : index
    %c0_14 = arith.constant 0 : index
    %4 = vector.load %arg6[%c0_12, %c0_13, %c0_14] : memref<4x6x8xf32, #tpu.memory_space<vmem>>, vector<4x6x8xf32>
    %5 = vector.extract_strided_slice %3 {offsets = [0, 0, 0], sizes = [4, 1, 128], strides = [1, 1, 1]} : vector<4x2x128xf32> to vector<4x1x128xf32>
    %6 = vector.extract_strided_slice %3 {offsets = [0, 1, 0], sizes = [4, 1, 128], strides = [1, 1, 1]} : vector<4x2x128xf32> to vector<4x1x128xf32>
    %7 = vector.extract_strided_slice %4 {offsets = [0, 0, 0], sizes = [4, 6, 1], strides = [1, 1, 1]} : vector<4x6x8xf32> to vector<4x6x1xf32>
    %8 = vector.extract_strided_slice %0 {offsets = [0, 0, 0], sizes = [4, 1, 128], strides = [1, 1, 1]} : vector<4x3x128xf32> to vector<4x1x128xf32>
    %9 = vector.broadcast %7 : vector<4x6x1xf32> to vector<4x6x128xf32>
    %10 = vector.broadcast %8 : vector<4x1x128xf32> to vector<4x6x128xf32>
    %11 = arith.mulf %9, %10 : vector<4x6x128xf32>
    %12 = vector.extract_strided_slice %4 {offsets = [0, 0, 1], sizes = [4, 6, 1], strides = [1, 1, 1]} : vector<4x6x8xf32> to vector<4x6x1xf32>
    %13 = vector.extract_strided_slice %0 {offsets = [0, 1, 0], sizes = [4, 1, 128], strides = [1, 1, 1]} : vector<4x3x128xf32> to vector<4x1x128xf32>
    %14 = vector.broadcast %12 : vector<4x6x1xf32> to vector<4x6x128xf32>
    %15 = vector.broadcast %13 : vector<4x1x128xf32> to vector<4x6x128xf32>
    %16 = arith.mulf %14, %15 : vector<4x6x128xf32>
    %17 = arith.addf %11, %16 : vector<4x6x128xf32>
    %18 = vector.extract_strided_slice %4 {offsets = [0, 0, 2], sizes = [4, 6, 1], strides = [1, 1, 1]} : vector<4x6x8xf32> to vector<4x6x1xf32>
    %19 = vector.extract_strided_slice %0 {offsets = [0, 2, 0], sizes = [4, 1, 128], strides = [1, 1, 1]} : vector<4x3x128xf32> to vector<4x1x128xf32>
    %20 = vector.broadcast %18 : vector<4x6x1xf32> to vector<4x6x128xf32>
    %21 = vector.broadcast %19 : vector<4x1x128xf32> to vector<4x6x128xf32>
    %22 = arith.mulf %20, %21 : vector<4x6x128xf32>
    %23 = arith.addf %17, %22 : vector<4x6x128xf32>
    %24 = vector.extract_strided_slice %4 {offsets = [0, 0, 3], sizes = [4, 6, 1], strides = [1, 1, 1]} : vector<4x6x8xf32> to vector<4x6x1xf32>
    %25 = vector.broadcast %24 : vector<4x6x1xf32> to vector<4x6x128xf32>
    %26 = arith.subf %25, %23 : vector<4x6x128xf32>
    %27 = vector.extract_strided_slice %1 {offsets = [0, 0, 0, 0], sizes = [4, 1, 6, 128], strides = [1, 1, 1, 1]} : vector<4x3x6x128xf32> to vector<4x1x6x128xf32>
    %28 = vector.shape_cast %27 : vector<4x1x6x128xf32> to vector<4x6x128xf32>
    %29 = vector.extract_strided_slice %4 {offsets = [0, 0, 0], sizes = [4, 6, 1], strides = [1, 1, 1]} : vector<4x6x8xf32> to vector<4x6x1xf32>
    %30 = vector.broadcast %29 : vector<4x6x1xf32> to vector<4x6x128xf32>
    %31 = arith.mulf %26, %30 : vector<4x6x128xf32>
    %32 = arith.subf %28, %31 : vector<4x6x128xf32>
    %33 = math.absf %32 : vector<4x6x128xf32>
    %34 = vector.extract_strided_slice %1 {offsets = [0, 1, 0, 0], sizes = [4, 1, 6, 128], strides = [1, 1, 1, 1]} : vector<4x3x6x128xf32> to vector<4x1x6x128xf32>
    %35 = vector.shape_cast %34 : vector<4x1x6x128xf32> to vector<4x6x128xf32>
    %36 = vector.extract_strided_slice %4 {offsets = [0, 0, 1], sizes = [4, 6, 1], strides = [1, 1, 1]} : vector<4x6x8xf32> to vector<4x6x1xf32>
    %37 = vector.broadcast %36 : vector<4x6x1xf32> to vector<4x6x128xf32>
    %38 = arith.mulf %26, %37 : vector<4x6x128xf32>
    %39 = arith.subf %35, %38 : vector<4x6x128xf32>
    %40 = math.absf %39 : vector<4x6x128xf32>
    %41 = arith.addf %33, %40 : vector<4x6x128xf32>
    %42 = vector.extract_strided_slice %1 {offsets = [0, 2, 0, 0], sizes = [4, 1, 6, 128], strides = [1, 1, 1, 1]} : vector<4x3x6x128xf32> to vector<4x1x6x128xf32>
    %43 = vector.shape_cast %42 : vector<4x1x6x128xf32> to vector<4x6x128xf32>
    %44 = vector.extract_strided_slice %4 {offsets = [0, 0, 2], sizes = [4, 6, 1], strides = [1, 1, 1]} : vector<4x6x8xf32> to vector<4x6x1xf32>
    %45 = vector.broadcast %44 : vector<4x6x1xf32> to vector<4x6x128xf32>
    %46 = arith.mulf %26, %45 : vector<4x6x128xf32>
    %47 = arith.subf %43, %46 : vector<4x6x128xf32>
    %48 = math.absf %47 : vector<4x6x128xf32>
    %49 = arith.addf %41, %48 : vector<4x6x128xf32>
    %cst = arith.constant -5.000000e-01 : f32
    %50 = vector.broadcast %cst : f32 to vector<4x6x128xf32>
    %51 = arith.mulf %50, %2 : vector<4x6x128xf32>
    %52 = math.exp %51 : vector<4x6x128xf32>
    %cst_15 = arith.constant 1.414200e+00 : f32
    %53 = vector.broadcast %cst_15 : f32 to vector<4x6x128xf32>
    %54 = arith.mulf %53, %52 : vector<4x6x128xf32>
    %55 = arith.mulf %54, %49 : vector<4x6x128xf32>
    %cst_16 = arith.constant 1.000000e-03 : f32
    %56 = vector.broadcast %cst_16 : f32 to vector<4x6x128xf32>
    %57 = arith.mulf %56, %2 : vector<4x6x128xf32>
    %58 = arith.addf %55, %57 : vector<4x6x128xf32>
    %cst_17 = arith.constant dense<0.000000e+00> : vector<4x1xf32>
    %59 = vector.multi_reduction <add>, %5, %cst_17 [2] : vector<4x1x128xf32> to vector<4x1xf32>
    %60 = vector.shape_cast %59 : vector<4x1xf32> to vector<4x1x1xf32>
    %cst_18 = arith.constant 0.000000e+00 : f32
    %61 = vector.broadcast %cst_18 : f32 to vector<4x1x1xf32>
    %62 = arith.cmpf ogt, %60, %61 : vector<4x1x1xf32>
    %cst_19 = arith.constant 1.000000e+00 : f32
    %63 = vector.broadcast %cst_19 : f32 to vector<4x1x1xf32>
    %64 = arith.maximumf %60, %63 : vector<4x1x1xf32>
    %cst_20 = arith.constant 1.000000e+00 : f32
    %65 = vector.broadcast %cst_20 : f32 to vector<4x1x1xf32>
    %66 = arith.divf %65, %64 : vector<4x1x1xf32>
    %cst_21 = arith.constant 0.000000e+00 : f32
    %67 = vector.broadcast %cst_21 : f32 to vector<4x1x1xf32>
    %68 = arith.select %62, %66, %67 : vector<4x1x1xi1>, vector<4x1x1xf32>
    %69 = vector.extract_strided_slice %4 {offsets = [0, 0, 4], sizes = [4, 6, 1], strides = [1, 1, 1]} : vector<4x6x8xf32> to vector<4x6x1xf32>
    %70 = vector.broadcast %68 : vector<4x1x1xf32> to vector<4x6x1xf32>
    %71 = arith.mulf %69, %70 : vector<4x6x1xf32>
    %72 = vector.broadcast %5 : vector<4x1x128xf32> to vector<4x6x128xf32>
    %73 = arith.mulf %58, %72 : vector<4x6x128xf32>
    %cst_22 = arith.constant dense<0.000000e+00> : vector<4x6xf32>
    %74 = vector.multi_reduction <add>, %73, %cst_22 [2] : vector<4x6x128xf32> to vector<4x6xf32>
    %75 = vector.shape_cast %74 : vector<4x6xf32> to vector<4x6x1xf32>
    %76 = arith.mulf %75, %71 : vector<4x6x1xf32>
    %77 = vector.shape_cast %76 : vector<4x6x1xf32> to vector<1x4x6x1xf32>
    %cst_23 = arith.constant dense<0.000000e+00> : vector<1xf32>
    %78 = vector.multi_reduction <add>, %77, %cst_23 [1, 2, 3] : vector<1x4x6x1xf32> to vector<1xf32>
    %79 = vector.shape_cast %78 : vector<1xf32> to vector<1x1x1x1xf32>
    %80 = vector.extract %79[0, 0, 0, 0] : f32 from vector<1x1x1x1xf32>
    %c0_24 = arith.constant 0 : index
    %c0_25 = arith.constant 0 : index
    %c0_26 = arith.constant 0 : index
    %81 = vector.load %arg4[%c0_24, %c0_25, %c0_26] : memref<4x18x128xf32, #tpu.memory_space<vmem>>, vector<4x18x128xf32>
    %82 = math.absf %81 : vector<4x18x128xf32>
    %83 = vector.shape_cast %82 : vector<4x18x128xf32> to vector<1x4x18x128xf32>
    %cst_27 = arith.constant dense<0.000000e+00> : vector<1xf32>
    %84 = vector.multi_reduction <add>, %83, %cst_27 [1, 2, 3] : vector<1x4x18x128xf32> to vector<1xf32>
    %85 = vector.shape_cast %84 : vector<1xf32> to vector<1x1x1x1xf32>
    %86 = vector.extract %85[0, 0, 0, 0] : f32 from vector<1x1x1x1xf32>
    %87 = arith.subf %6, %5 : vector<4x1x128xf32>
    %88 = math.absf %87 : vector<4x1x128xf32>
    %89 = vector.shape_cast %88 : vector<4x1x128xf32> to vector<1x4x1x128xf32>
    %cst_28 = arith.constant dense<0.000000e+00> : vector<1xf32>
    %90 = vector.multi_reduction <add>, %89, %cst_28 [1, 2, 3] : vector<1x4x1x128xf32> to vector<1xf32>
    %91 = vector.shape_cast %90 : vector<1xf32> to vector<1x1x1x1xf32>
    %92 = vector.extract %91[0, 0, 0, 0] : f32 from vector<1x1x1x1xf32>
    %93 = tpu.iota {dimensions = array<i32: 2>} : vector<1x1x128xi32>
    %c0_i32 = arith.constant 0 : i32
    %94 = vector.broadcast %c0_i32 : i32 to vector<1x1x128xi32>
    %95 = arith.cmpi eq, %93, %94 : vector<1x1x128xi32>
    %cst_29 = arith.constant 0.000000e+00 : f32
    %96 = vector.broadcast %80 : f32 to vector<1x1x128xf32>
    %97 = vector.broadcast %cst_29 : f32 to vector<1x1x128xf32>
    %98 = arith.select %95, %96, %97 : vector<1x1x128xi1>, vector<1x1x128xf32>
    %c1_i32 = arith.constant 1 : i32
    %99 = vector.broadcast %c1_i32 : i32 to vector<1x1x128xi32>
    %100 = arith.cmpi eq, %93, %99 : vector<1x1x128xi32>
    %cst_30 = arith.constant 0.000000e+00 : f32
    %101 = vector.broadcast %86 : f32 to vector<1x1x128xf32>
    %102 = vector.broadcast %cst_30 : f32 to vector<1x1x128xf32>
    %103 = arith.select %100, %101, %102 : vector<1x1x128xi1>, vector<1x1x128xf32>
    %104 = arith.addf %98, %103 : vector<1x1x128xf32>
    %c2_i32 = arith.constant 2 : i32
    %105 = vector.broadcast %c2_i32 : i32 to vector<1x1x128xi32>
    %106 = arith.cmpi eq, %93, %105 : vector<1x1x128xi32>
    %cst_31 = arith.constant 0.000000e+00 : f32
    %107 = vector.broadcast %92 : f32 to vector<1x1x128xf32>
    %108 = vector.broadcast %cst_31 : f32 to vector<1x1x128xf32>
    %109 = arith.select %106, %107, %108 : vector<1x1x128xi1>, vector<1x1x128xf32>
    %110 = arith.addf %104, %109 : vector<1x1x128xf32>
    %c0_32 = arith.constant 0 : index
    %c0_33 = arith.constant 0 : index
    %c0_34 = arith.constant 0 : index
    %111 = vector.load %arg7[%c0_32, %c0_33, %c0_34] : memref<1x1x128xf32, #tpu.memory_space<vmem>>, vector<1x1x128xf32>
    tpu.vector_store %arg7[%c0_32, %c0_33, %c0_34], %110 {strides = array<i32>} : memref<1x1x128xf32, #tpu.memory_space<vmem>>, vector<1x1x128xf32>,
    return
  }
  func.func @transform_0(%arg0: i32) -> (i32, i32, i32) {
    %c0_i32 = arith.constant 0 : i32
    %c0_i32_0 = arith.constant 0 : i32
    %c0_i32_1 = arith.constant 0 : i32
    return %arg0, %c0_i32, %c0_i32_0 : i32, i32, i32
  }
  func.func @transform_1(%arg0: i32) -> (i32, i32, i32, i32) {
    %c0_i32 = arith.constant 0 : i32
    %c0_i32_0 = arith.constant 0 : i32
    %c0_i32_1 = arith.constant 0 : i32
    %c0_i32_2 = arith.constant 0 : i32
    return %arg0, %c0_i32, %c0_i32_0, %c0_i32_1 : i32, i32, i32, i32
  }
  func.func @transform_2(%arg0: i32) -> (i32, i32, i32) {
    %c0_i32 = arith.constant 0 : i32
    %c0_i32_0 = arith.constant 0 : i32
    %c0_i32_1 = arith.constant 0 : i32
    return %arg0, %c0_i32, %c0_i32_0 : i32, i32, i32
  }
  func.func @transform_3(%arg0: i32) -> (i32, i32, i32) {
    %c0_i32 = arith.constant 0 : i32
    %c0_i32_0 = arith.constant 0 : i32
    %c0_i32_1 = arith.constant 0 : i32
    return %arg0, %c0_i32, %c0_i32_0 : i32, i32, i32
  }
  func.func @transform_4(%arg0: i32) -> (i32, i32, i32) {
    %c0_i32 = arith.constant 0 : i32
    %c0_i32_0 = arith.constant 0 : i32
    %c0_i32_1 = arith.constant 0 : i32
    return %arg0, %c0_i32, %c0_i32_0 : i32, i32, i32
  }
  func.func @transform_5(%arg0: i32) -> (i32, i32, i32) {
    %c0_i32 = arith.constant 0 : i32
    %c0_i32_0 = arith.constant 0 : i32
    %c0_i32_1 = arith.constant 0 : i32
    return %arg0, %c0_i32, %c0_i32_0 : i32, i32, i32
  }
  func.func @transform_6(%arg0: i32) -> (i32, i32, i32) {
    %c0_i32 = arith.constant 0 : i32
    %c0_i32_0 = arith.constant 0 : i32
    %c0_i32_1 = arith.constant 0 : i32
    return %arg0, %c0_i32, %c0_i32_0 : i32, i32, i32
  }
}

</mosaic_0001>

<llo_original>
// kernel: tpu_custom_call.1
$region0: #{tpu_custom_call.1}
  #allocation0 [shape = 'u32[]', space=smem, size = 0x4, offset = 0x4, fixed_abs, tag = 'smem constant byte address 0x4 - core index']
  #allocation1 [shape = 'u32[144,128]{1,0:T(1,128)}', space=vmem, size = 0x12000, scoped, tag = 'internal scratch']
  %s0 = inlined_call_operand.vmem [shape: f32[4,3,128], index: 0, kind: input, shape index: {}]
  %s1 = inlined_call_operand.vmem [shape: f32[4,3,6,128], index: 1, kind: input, shape index: {}]
  %s2 = inlined_call_operand.vmem [shape: f32[4,6,128], index: 2, kind: input, shape index: {}]
  %s3 = inlined_call_operand.vmem [shape: f32[4,18,128], index: 3, kind: input, shape index: {}]
  %s4 = inlined_call_operand.vmem [shape: f32[4,2,128], index: 4, kind: input, shape index: {}]
  %s5 = inlined_call_operand.vmem [shape: f32[4,6,8], index: 5, kind: input, shape index: {}]
  %s6 = inlined_call_operand.hbm [shape: f32[1,1,128], index: 6, kind: output, shape index: {}]
  %s7 = sld [smem:[#allocation0]]
  $region34: #{tpu_custom_call.1} parent=0
    _
  %s9 = ssub.s32 1, %s7
  %s10 = scalar_select 0, %s9, %s7
  $region1: #{tpu_custom_call.1} parent=0
    #allocation2 [shape = 'u8[512]{0}', space=vmem, size = 0x400, scoped, tag = 'output window, operand 0, single buffered']
    #allocation3 [shape = 's32[1]{0}', space=sflag, size = 0x4, scoped, tag = 'scoped memory for tpu_custom_call.1']
    %11 = vsyncpa [#allocation3], 0
    // Predicated region
    $region2: #{tpu_custom_call.1} parent=1 // pred_check
      _
    $region3: #{tpu_custom_call.1} parent=1 // pred_check_branch
      %13 = sbr.rel (0) target = $region5
    $region4: #{tpu_custom_call.1} parent=1 // pred_region
      _
    $region5: #{tpu_custom_call.1} parent=1 // pred_fallthru
      _
    // Predicated region
    $region6: #{tpu_custom_call.1} parent=1 // pred_check
      _
    $region7: #{tpu_custom_call.1} parent=1 // pred_check_branch
      %15 = sbr.rel (0) target = $region9
    $region8: #{tpu_custom_call.1} parent=1 // pred_region
      _
    $region9: #{tpu_custom_call.1} parent=1 // pred_fallthru
      _
    // Predicated region
    $region10: #{tpu_custom_call.1} parent=1 // pred_check
      _
    $region11: #{tpu_custom_call.1} parent=1 // pred_check_branch
      %17 = sbr.rel (0) target = $region13
    $region12: #{tpu_custom_call.1} parent=1 // pred_region
      _
    $region13: #{tpu_custom_call.1} parent=1 // pred_fallthru
      _
    // Predicated region
    $region14: #{tpu_custom_call.1} parent=1 // pred_check
      _
    $region15: #{tpu_custom_call.1} parent=1 // pred_check_branch
      %19 = sbr.rel (0) target = $region17
    $region16: #{tpu_custom_call.1} parent=1 // pred_region
      _
    $region17: #{tpu_custom_call.1} parent=1 // pred_fallthru
      _
    // Predicated region
    $region18: #{tpu_custom_call.1} parent=1 // pred_check
      _
    $region19: #{tpu_custom_call.1} parent=1 // pred_check_branch
      %21 = sbr.rel (0) target = $region21
    $region20: #{tpu_custom_call.1} parent=1 // pred_region
      _
    $region21: #{tpu_custom_call.1} parent=1 // pred_fallthru
      _
    // Predicated region
    $region22: #{tpu_custom_call.1} parent=1 // pred_check
      _
    $region23: #{tpu_custom_call.1} parent=1 // pred_check_branch
      %23 = sbr.rel (0) target = $region25
    $region24: #{tpu_custom_call.1} parent=1 // pred_region
      _
    $region25: #{tpu_custom_call.1} parent=1 // pred_fallthru
      _
    %v24 = vld [vmem:[%s0] sm:$0x7]
    %v25 = vld [vmem:[%s0 + $0x4] sm:$0x7]
    %v26 = vld [vmem:[%s0 + $0x8] sm:$0x7]
    %v27 = vld [vmem:[%s0 + $0xc] sm:$0x7]
    %v28 = vld [vmem:[%s1] sm:$0x3f]
    %v29 = vld [vmem:[%s1 + $0x8] sm:$0x3f]
    %v30 = vld [vmem:[%s1 + $0x10] sm:$0x3f]
    %v31 = vld [vmem:[%s1 + $0x18] sm:$0x3f]
    %v32 = vld [vmem:[%s1 + $0x20] sm:$0x3f]
    %v33 = vld [vmem:[%s1 + $0x28] sm:$0x3f]
    %v34 = vld [vmem:[%s1 + $0x30] sm:$0x3f]
    %v35 = vld [vmem:[%s1 + $0x38] sm:$0x3f]
    %v36 = vld [vmem:[%s1 + $0x40] sm:$0x3f]
    %v37 = vld [vmem:[%s1 + $0x48] sm:$0x3f]
    %v38 = vld [vmem:[%s1 + $0x50] sm:$0x3f]
    %v39 = vld [vmem:[%s1 + $0x58] sm:$0x3f]
    %v40 = vld [vmem:[%s2] sm:$0x3f]
    %v41 = vld [vmem:[%s2 + $0x8] sm:$0x3f]
    %v42 = vld [vmem:[%s2 + $0x10] sm:$0x3f]
    %v43 = vld [vmem:[%s2 + $0x18] sm:$0x3f]
    %v44 = vld [vmem:[%s4] sm:$0x3]
    %v45 = vld [vmem:[%s4 + $0x2] sm:$0x3]
    %v46 = vld [vmem:[%s4 + $0x4] sm:$0x3]
    %v47 = vld [vmem:[%s4 + $0x6] sm:$0x3]
    %v48 = vld [vmem:[%s5] sm:$0x3f]
    %v49 = vld [vmem:[%s5 + $0x8] sm:$0x3f]
    %v50 = vld [vmem:[%s5 + $0x10] sm:$0x3f]
    %v51 = vld [vmem:[%s5 + $0x18] sm:$0x3f]
    %53 = vset.pattern.permute.xlu0 0
    %54 = vperm.xlu0 %53, %v48
    %v55 = vpop.permute.xlu0 %54
    %58 = vset.pattern.permute.xlu0 0
    %59 = vperm.xlu0 %58, %v49
    %v60 = vpop.permute.xlu0 %59
    %63 = vset.pattern.permute.xlu0 0
    %64 = vperm.xlu0 %63, %v50
    %v65 = vpop.permute.xlu0 %64
    %68 = vset.pattern.permute.xlu0 0
    %69 = vperm.xlu0 %68, %v51
    %v70 = vpop.permute.xlu0 %69
    %v72 = vlaneseq
    %v73 = vshrl.u32 %v72, 7
    %v74 = vsub.s32 0, %v73
    %v75 = vrot.slane %v24, %v74
    %v76 = vlaneseq
    %v77 = vshrl.u32 %v76, 7
    %v78 = vsub.s32 0, %v77
    %v79 = vrot.slane %v25, %v78
    %v80 = vlaneseq
    %v81 = vshrl.u32 %v80, 7
    %v82 = vsub.s32 0, %v81
    %v83 = vrot.slane %v26, %v82
    %v84 = vlaneseq
    %v85 = vshrl.u32 %v84, 7
    %v86 = vsub.s32 0, %v85
    %v87 = vrot.slane %v27, %v86
    %v88 = vmul.f32 %v55, %v75
    %v89 = vmul.f32 %v60, %v79
    %v90 = vmul.f32 %v65, %v83
    %v91 = vmul.f32 %v70, %v87
    %92 = vset.pattern.permute.xlu0 1
    %93 = vperm.xlu0 %92, %v48
    %v94 = vpop.permute.xlu0 %93
    %96 = vset.pattern.permute.xlu0 1
    %97 = vperm.xlu0 %96, %v49
    %v98 = vpop.permute.xlu0 %97
    %100 = vset.pattern.permute.xlu0 1
    %101 = vperm.xlu0 %100, %v50
    %v102 = vpop.permute.xlu0 %101
    %104 = vset.pattern.permute.xlu0 1
    %105 = vperm.xlu0 %104, %v51
    %v106 = vpop.permute.xlu0 %105
    %v108 = vlaneseq
    %v109 = vshrl.u32 %v108, 7
    %v110 = vsub.s32 1, %v109
    %v111 = vrot.slane %v24, %v110
    %v112 = vlaneseq
    %v113 = vshrl.u32 %v112, 7
    %v114 = vsub.s32 1, %v113
    %v115 = vrot.slane %v25, %v114
    %v116 = vlaneseq
    %v117 = vshrl.u32 %v116, 7
    %v118 = vsub.s32 1, %v117
    %v119 = vrot.slane %v26, %v118
    %v120 = vlaneseq
    %v121 = vshrl.u32 %v120, 7
    %v122 = vsub.s32 1, %v121
    %v123 = vrot.slane %v27, %v122
    %v124 = vmul.f32 %v94, %v111
    %v125 = vmul.f32 %v98, %v115
    %v126 = vmul.f32 %v102, %v119
    %v127 = vmul.f32 %v106, %v123
    %v128 = vadd.f32 %v88, %v124
    %v129 = vadd.f32 %v89, %v125
    %v130 = vadd.f32 %v90, %v126
    %v131 = vadd.f32 %v91, %v127
    %132 = vset.pattern.permute.xlu0 2
    %133 = vperm.xlu0 %132, %v48
    %v134 = vpop.permute.xlu0 %133
    %136 = vset.pattern.permute.xlu0 2
    %137 = vperm.xlu0 %136, %v49
    %v138 = vpop.permute.xlu0 %137
    %140 = vset.pattern.permute.xlu0 2
    %141 = vperm.xlu0 %140, %v50
    %v142 = vpop.permute.xlu0 %141
    %144 = vset.pattern.permute.xlu0 2
    %145 = vperm.xlu0 %144, %v51
    %v146 = vpop.permute.xlu0 %145
    %v148 = vlaneseq
    %v149 = vshrl.u32 %v148, 7
    %v150 = vsub.s32 2, %v149
    %v151 = vrot.slane %v24, %v150
    %v152 = vlaneseq
    %v153 = vshrl.u32 %v152, 7
    %v154 = vsub.s32 2, %v153
    %v155 = vrot.slane %v25, %v154
    %v156 = vlaneseq
    %v157 = vshrl.u32 %v156, 7
    %v158 = vsub.s32 2, %v157
    %v159 = vrot.slane %v26, %v158
    %v160 = vlaneseq
    %v161 = vshrl.u32 %v160, 7
    %v162 = vsub.s32 2, %v161
    %v163 = vrot.slane %v27, %v162
    %v164 = vmul.f32 %v134, %v151
    %v165 = vmul.f32 %v138, %v155
    %v166 = vmul.f32 %v142, %v159
    %v167 = vmul.f32 %v146, %v163
    %v168 = vadd.f32 %v128, %v164
    %v169 = vadd.f32 %v129, %v165
    %v170 = vadd.f32 %v130, %v166
    %v171 = vadd.f32 %v131, %v167
    %172 = vset.pattern.permute.xlu0 3
    %173 = vperm.xlu0 %172, %v48
    %v174 = vpop.permute.xlu0 %173
    %176 = vset.pattern.permute.xlu0 3
    %177 = vperm.xlu0 %176, %v49
    %v178 = vpop.permute.xlu0 %177
    %180 = vset.pattern.permute.xlu0 3
    %181 = vperm.xlu0 %180, %v50
    %v182 = vpop.permute.xlu0 %181
    %184 = vset.pattern.permute.xlu0 3
    %185 = vperm.xlu0 %184, %v51
    %v186 = vpop.permute.xlu0 %185
    %v188 = vsub.f32 %v174, %v168
    %v189 = vsub.f32 %v178, %v169
    %v190 = vsub.f32 %v182, %v170
    %v191 = vsub.f32 %v186, %v171
    %v192 = vmul.f32 %v188, %v55
    %v193 = vmul.f32 %v189, %v60
    %v194 = vmul.f32 %v190, %v65
    %v195 = vmul.f32 %v191, %v70
    %v196 = vsub.f32 %v28, %v192
    %v197 = vsub.f32 %v31, %v193
    %v198 = vsub.f32 %v34, %v194
    %v199 = vsub.f32 %v37, %v195
    %v200 = vand.u32 2147483647, %v196
    %v201 = vand.u32 2147483647, %v197
    %v202 = vand.u32 2147483647, %v198
    %v203 = vand.u32 2147483647, %v199
    %v204 = vmul.f32 %v188, %v94
    %v205 = vmul.f32 %v189, %v98
    %v206 = vmul.f32 %v190, %v102
    %v207 = vmul.f32 %v191, %v106
    %v208 = vsub.f32 %v29, %v204
    %v209 = vsub.f32 %v32, %v205
    %v210 = vsub.f32 %v35, %v206
    %v211 = vsub.f32 %v38, %v207
    %v212 = vand.u32 2147483647, %v208
    %v213 = vand.u32 2147483647, %v209
    %v214 = vand.u32 2147483647, %v210
    %v215 = vand.u32 2147483647, %v211
    %v216 = vadd.f32 %v200, %v212
    %v217 = vadd.f32 %v201, %v213
    %v218 = vadd.f32 %v202, %v214
    %v219 = vadd.f32 %v203, %v215
    %v220 = vmul.f32 %v188, %v134
    %v221 = vmul.f32 %v189, %v138
    %v222 = vmul.f32 %v190, %v142
    %v223 = vmul.f32 %v191, %v146
    %v224 = vsub.f32 %v30, %v220
    %v225 = vsub.f32 %v33, %v221
    %v226 = vsub.f32 %v36, %v222
    %v227 = vsub.f32 %v39, %v223
    %v228 = vand.u32 2147483647, %v224
    %v229 = vand.u32 2147483647, %v225
    %v230 = vand.u32 2147483647, %v226
    %v231 = vand.u32 2147483647, %v227
    %v232 = vadd.f32 %v216, %v228
    %v233 = vadd.f32 %v217, %v229
    %v234 = vadd.f32 %v218, %v230
    %v235 = vadd.f32 %v219, %v231
    %v236 = vmul.f32 %v40, -0.5
    %v237 = vmul.f32 %v41, -0.5
    %v238 = vmul.f32 %v42, -0.5
    %v239 = vmul.f32 %v43, -0.5
    %v240 = vmul.f32 %v236, 1.442695
    %v241 = vpow.pop %v240
    %v242 = vmul.f32 %v237, 1.442695
    %v243 = vpow.pop %v242
    %v244 = vmul.f32 %v238, 1.442695
    %v245 = vpow.pop %v244
    %v246 = vmul.f32 %v239, 1.442695
    %v247 = vpow.pop %v246
    %v248 = vmul.f32 %v241, 1.4142
    %v249 = vmul.f32 %v243, 1.4142
    %v250 = vmul.f32 %v245, 1.4142
    %v251 = vmul.f32 %v247, 1.4142
    %v252 = vmul.f32 %v248, %v232
    %v253 = vmul.f32 %v249, %v233
    %v254 = vmul.f32 %v250, %v234
    %v255 = vmul.f32 %v251, %v235
    %v256 = vmul.f32 %v40, 0.001
    %v257 = vmul.f32 %v41, 0.001
    %v258 = vmul.f32 %v42, 0.001
    %v259 = vmul.f32 %v43, 0.001
    %v260 = vadd.f32 %v252, %v256
    %v261 = vadd.f32 %v253, %v257
    %v262 = vadd.f32 %v254, %v258
    %v263 = vadd.f32 %v255, %v259
    %vm264 = vcmask 1040384
    %v265 = vsel %vm264, %v44, 0.0
    %266 = vadd.xlane.f32.xlu0 %v265
    %v267 = vpop.xlane.xlu0 %266
    %v268 = vsel %vm264, %v45, 0.0
    %269 = vadd.xlane.f32.xlu0 %v268
    %v270 = vpop.xlane.xlu0 %269
    %v271 = vsel %vm264, %v46, 0.0
    %272 = vadd.xlane.f32.xlu0 %v271
    %v273 = vpop.xlane.xlu0 %272
    %v274 = vsel %vm264, %v47, 0.0
    %275 = vadd.xlane.f32.xlu0 %v274
    %v276 = vpop.xlane.xlu0 %275
    %vm277 = vcmp.gt.f32.partialorder %v267, 0.0
    %vm278 = vcmp.gt.f32.partialorder %v270, 0.0
    %vm279 = vcmp.gt.f32.partialorder %v273, 0.0
    %vm280 = vcmp.gt.f32.partialorder %v276, 0.0
    %v281 = vmax.f32 %v267, 1.0
    %v282 = vmax.f32 %v270, 1.0
    %v283 = vmax.f32 %v273, 1.0
    %v284 = vmax.f32 %v276, 1.0
    %v285 = vrcp.pop %v281
    %v286 = vmul.f32 1.0, %v285
    %v287 = vrcp.pop %v282
    %v288 = vmul.f32 1.0, %v287
    %v289 = vrcp.pop %v283
    %v290 = vmul.f32 1.0, %v289
    %v291 = vrcp.pop %v284
    %v292 = vmul.f32 1.0, %v291
    %v293 = vsel %vm277, %v286, 0.0
    %v294 = vsel %vm278, %v288, 0.0
    %v295 = vsel %vm279, %v290, 0.0
    %v296 = vsel %vm280, %v292, 0.0
    %v297 = vlaneseq
    %v298 = vshrl.u32 %v297, 7
    %v299 = vsub.s32 0, %v298
    %v300 = vrot.slane %v293, %v299
    %v301 = vlaneseq
    %v302 = vshrl.u32 %v301, 7
    %v303 = vsub.s32 0, %v302
    %v304 = vrot.slane %v294, %v303
    %v305 = vlaneseq
    %v306 = vshrl.u32 %v305, 7
    %v307 = vsub.s32 0, %v306
    %v308 = vrot.slane %v295, %v307
    %v309 = vlaneseq
    %v310 = vshrl.u32 %v309, 7
    %v311 = vsub.s32 0, %v310
    %v312 = vrot.slane %v296, %v311
    %v313 = vmul.f32 %v48, %v300
    %v314 = vmul.f32 %v49, %v304
    %v315 = vmul.f32 %v50, %v308
    %v316 = vmul.f32 %v51, %v312
    %v317 = vlaneseq
    %v318 = vshrl.u32 %v317, 7
    %v319 = vsub.s32 0, %v318
    %v320 = vrot.slane %v44, %v319
    %v321 = vlaneseq
    %v322 = vshrl.u32 %v321, 7
    %v323 = vsub.s32 0, %v322
    %v324 = vrot.slane %v45, %v323
    %v325 = vlaneseq
    %v326 = vshrl.u32 %v325, 7
    %v327 = vsub.s32 0, %v326
    %v328 = vrot.slane %v46, %v327
    %v329 = vlaneseq
    %v330 = vshrl.u32 %v329, 7
    %v331 = vsub.s32 0, %v330
    %v332 = vrot.slane %v47, %v331
    %v333 = vmul.f32 %v260, %v320
    %v334 = vmul.f32 %v261, %v324
    %v335 = vmul.f32 %v262, %v328
    %v336 = vmul.f32 %v263, %v332
    %vm337 = vcmask 1045504
    %v338 = vsel %vm337, %v333, 0.0
    %339 = vadd.xlane.f32.xlu0 %v338
    %v340 = vpop.xlane.xlu0 %339
    %v341 = vsel %vm337, %v334, 0.0
    %342 = vadd.xlane.f32.xlu0 %v341
    %v343 = vpop.xlane.xlu0 %342
    %v344 = vsel %vm337, %v335, 0.0
    %345 = vadd.xlane.f32.xlu0 %v344
    %v346 = vpop.xlane.xlu0 %345
    %v347 = vsel %vm337, %v336, 0.0
    %348 = vadd.xlane.f32.xlu0 %v347
    %v349 = vpop.xlane.xlu0 %348
    %v350 = vmul.f32 %v340, %v313
    %v351 = vmul.f32 %v343, %v314
    %v352 = vmul.f32 %v346, %v315
    %v353 = vmul.f32 %v349, %v316
    %358 = vrot.lane.b32.xlu0 %v350, 124
    %v359 = vpop.permute.xlu0 %358
    %360 = vrot.lane.b32.xlu0 %v351, 124
    %v361 = vpop.permute.xlu0 %360
    %362 = vrot.lane.b32.xlu0 %v352, 124
    %v363 = vpop.permute.xlu0 %362
    %364 = vrot.lane.b32.xlu0 %v353, 124
    %v365 = vpop.permute.xlu0 %364
    %vm370 = vcmask 5120
    %v371 = vsel %vm370, %v359, 0.0
    %v372 = vsel %vm370, %v361, 0.0
    %v373 = vadd.f32 %v371, %v372
    %v374 = vsel %vm370, %v363, 0.0
    %v375 = vadd.f32 %v373, %v374
    %v376 = vsel %vm370, %v365, 0.0
    %v377 = vadd.f32 %v375, %v376
    %378 = vadd.xlane.f32.xlu0 %v377
    %v379 = vpop.xlane.xlu0 %378
    %v380 = vrot.slane %v379, 4
    %v381 = vadd.f32 %v379, %v380
    %v382 = vrot.slane %v381, 2
    %v383 = vadd.f32 %v381, %v382
    %v384 = vrot.slane %v383, 1
    %v385 = vadd.f32 %v383, %v384
    %s386 = vtos %v385
    %v387 = vld [vmem:[%s3] sm:$0xff]
    %v388 = vld [vmem:[%s3 + $0x8] sm:$0xff]
    %v389 = vld [vmem:[%s3 + $0x10] sm:$0x3]
    %v390 = vld [vmem:[%s3 + $0x18] sm:$0xff]
    %v391 = vld [vmem:[%s3 + $0x20] sm:$0xff]
    %v392 = vld [vmem:[%s3 + $0x28] sm:$0x3]
    %v393 = vld [vmem:[%s3 + $0x30] sm:$0xff]
    %v394 = vld [vmem:[%s3 + $0x38] sm:$0xff]
    %v395 = vld [vmem:[%s3 + $0x40] sm:$0x3]
    %v396 = vld [vmem:[%s3 + $0x48] sm:$0xff]
    %v397 = vld [vmem:[%s3 + $0x50] sm:$0xff]
    %v398 = vld [vmem:[%s3 + $0x58] sm:$0x3]
    %v399 = vand.u32 2147483647, %v387
    %v400 = vand.u32 2147483647, %v388
    %v401 = vand.u32 2147483647, %v389
    %v402 = vand.u32 2147483647, %v390
    %v403 = vand.u32 2147483647, %v391
    %v404 = vand.u32 2147483647, %v392
    %v405 = vand.u32 2147483647, %v393
    %v406 = vand.u32 2147483647, %v394
    %v407 = vand.u32 2147483647, %v395
    %v408 = vand.u32 2147483647, %v396
    %v409 = vand.u32 2147483647, %v397
    %v410 = vand.u32 2147483647, %v398
    %v411 = vadd.f32 %v399, %v400
    %vm412 = vcmask 1041408
    %v413 = vsel %vm412, %v401, 0.0
    %v414 = vadd.f32 %v411, %v413
    %v415 = vadd.f32 %v414, %v402
    %v416 = vadd.f32 %v415, %v403
    %v417 = vsel %vm412, %v404, 0.0
    %v418 = vadd.f32 %v416, %v417
    %v419 = vadd.f32 %v418, %v405
    %v420 = vadd.f32 %v419, %v406
    %v421 = vsel %vm412, %v407, 0.0
    %v422 = vadd.f32 %v420, %v421
    %v423 = vadd.f32 %v422, %v408
    %v424 = vadd.f32 %v423, %v409
    %v425 = vsel %vm412, %v410, 0.0
    %v426 = vadd.f32 %v424, %v425
    %427 = vadd.xlane.f32.xlu0 %v426
    %v428 = vpop.xlane.xlu0 %427
    %v429 = vrot.slane %v428, 4
    %v430 = vadd.f32 %v428, %v429
    %v431 = vrot.slane %v430, 2
    %v432 = vadd.f32 %v430, %v431
    %v433 = vrot.slane %v432, 1
    %v434 = vadd.f32 %v432, %v433
    %s435 = vtos %v434
    %v440 = vrot.slane %v44, 7
    %v441 = vrot.slane %v45, 7
    %v442 = vrot.slane %v46, 7
    %v443 = vrot.slane %v47, 7
    %v448 = vsub.f32 %v44, %v440
    %v449 = vsub.f32 %v45, %v441
    %v450 = vsub.f32 %v46, %v442
    %v451 = vsub.f32 %v47, %v443
    %v452 = vand.u32 2147483647, %v448
    %v453 = vand.u32 2147483647, %v449
    %v454 = vand.u32 2147483647, %v450
    %v455 = vand.u32 2147483647, %v451
    %v460 = vrot.slane %v452, 1
    %v461 = vrot.slane %v453, 1
    %v462 = vrot.slane %v454, 1
    %v463 = vrot.slane %v455, 1
    %v468 = vsel %vm264, %v460, 0.0
    %v469 = vsel %vm264, %v461, 0.0
    %v470 = vadd.f32 %v468, %v469
    %v471 = vsel %vm264, %v462, 0.0
    %v472 = vadd.f32 %v470, %v471
    %v473 = vsel %vm264, %v463, 0.0
    %v474 = vadd.f32 %v472, %v473
    %475 = vadd.xlane.f32.xlu0 %v474
    %v476 = vpop.xlane.xlu0 %475
    %v477 = vrot.slane %v476, 4
    %v478 = vadd.f32 %v476, %v477
    %v479 = vrot.slane %v478, 2
    %v480 = vadd.f32 %v478, %v479
    %v481 = vrot.slane %v480, 1
    %v482 = vadd.f32 %v480, %v481
    %s483 = vtos %v482
    %v484 = vlaneseq
    %v485 = vand.u32 %v484, 127
    %vm486 = vcmp.eq.s32.totalorder %v485, 0
    %v487 = vstv %s386
    %v488 = vsel %vm486, %v487, 0.0
    %vm489 = vcmp.eq.s32.totalorder %v485, 1
    %v490 = vstv %s435
    %v491 = vsel %vm489, %v490, 0.0
    %v492 = vadd.f32 %v488, %v491
    %vm493 = vcmp.eq.s32.totalorder %v485, 2
    %v494 = vstv %s483
    %v495 = vsel %vm493, %v494, 0.0
    %v496 = vadd.f32 %v492, %v495
    %497 = vst [vmem:[#allocation2] sm:$0x1] %v496
    // Predicated region
    $region26: #{tpu_custom_call.1} parent=1 // pred_check
      _
    $region27: #{tpu_custom_call.1} parent=1 // pred_check_branch
      %499 = sbr.rel (0) target = $region29
    $region28: #{tpu_custom_call.1} parent=1 // pred_region
      %s501 = ssub.s32 16, 16
      %502 = vsyncadd [#allocation3], %s501
      %s504 = sshll.u32 [#allocation2], 4
      %s505 = int_to_ptr.vmem [resolvable:$true] %s504
      %507 = dma.vmem_to_hbm [thread:$0]  %s505, 16, %s6, [#allocation3]
    $region29: #{tpu_custom_call.1} parent=1 // pred_fallthru
      _
    // Predicated region
    $region30: #{tpu_custom_call.1} parent=1 // pred_check
      _
    $region31: #{tpu_custom_call.1} parent=1 // pred_check_branch
      %509 = sbr.rel (0) target = $region33
    $region32: #{tpu_custom_call.1} parent=1 // pred_region
      %510 = dma.done [#allocation3], 16
    $region33: #{tpu_custom_call.1} parent=1 // pred_fallthru
      _
    %511 = vsyncpa [#allocation3], 1

</llo_original>
